<compile_context>
chip_gen: v7x
topology: tpu7x:2x2x1
jax: 0.10.0
libtpu: 0.0.40
codegen_flags: <defaults>
</compile_context>

<pallas_src>
import jax
import jax.numpy as jnp
import numpy as np
from jax.experimental import pallas as pl
from jax.experimental.pallas import tpu as pltpu

LANES = 128
SUBLANES_BF16 = 16  # bf16 sublane packing


def _round_up(x, m):
    return ((x + m - 1) // m) * m


def _actor_ppo_kernel(x_ref, w1_ref, w23_ref, b_ref, o_ref):
    """out = tanh(L3(relu(L2(relu(L1(x))))))

    x_ref  : (TB, S)     bf16, streamed per grid step (S = real state_dim)
    w1_ref : (S,  D)     bf16, resident
    w23_ref: (2,  D, D)  bf16, resident (layers 2 and 3, zero padded)
    b_ref  : (3,  1, D)  f32,  resident
    o_ref  : (TB, D)     bf16, lane-dense output block

    MXU dots use bf16 operands with f32 accumulation; the elementwise chain
    (bias add, ReLU, tanh) stays in f32 for v5e's f32-only VPU/EUP.
    """
    x = x_ref[...]
    h = jnp.dot(x, w1_ref[...], preferred_element_type=jnp.float32)
    h = jnp.maximum(h + b_ref[0], 0.0)                          # Linear + ReLU
    h = jnp.dot(h.astype(jnp.bfloat16), w23_ref[0],
                preferred_element_type=jnp.float32)
    h = jnp.maximum(h + b_ref[1], 0.0)                          # Linear + ReLU
    h = jnp.dot(h.astype(jnp.bfloat16), w23_ref[1],
                preferred_element_type=jnp.float32)
    o_ref[...] = jnp.tanh(h + b_ref[2]).astype(o_ref.dtype)     # Linear + tanh


def pack_params(params, state_dim, mid_dim, action_dim):
    """One-time packing into the kernel's canonical layout (do NOT redo every
    forward during training).  Hidden/output dims are padded to D = multiple
    of 128 lanes; the state_dim axis of w1 is left at its real size."""
    D = _round_up(max(mid_dim, action_dim), LANES)

    def pad_w(w, r, c):
        return jnp.zeros((D, D), jnp.float32).at[:r, :c].set(w)

    def pad_b(b, c):
        return jnp.zeros((1, D), jnp.float32).at[:, :c].set(b.reshape(1, -1))

    w1 = jnp.zeros((state_dim, D), jnp.float32).at[:, :mid_dim].set(params["w1"])
    w23 = jnp.stack([pad_w(params["w2"], mid_dim, mid_dim),
                     pad_w(params["w3"], mid_dim, action_dim)])
    b = jnp.stack([pad_b(params["b1"], mid_dim),
                   pad_b(params["b2"], mid_dim),
                   pad_b(params["b3"], action_dim)])
    return dict(w1=w1.astype(jnp.bfloat16),
                w23=w23.astype(jnp.bfloat16),
                b=b,                      # biases stay f32 (elementwise in f32)
                dims=(state_dim, mid_dim, action_dim),
                D=D)


def actor_ppo_forward(state, packed, *, tile_b=1024):
    """state: (B, state_dim) f32.  packed: output of pack_params."""
    B, state_dim = state.shape
    s_dim, mid_dim, action_dim = packed["dims"]
    assert state_dim == s_dim
    D = packed["D"]

    # Batch tiling: tight padding (TB ~= cdiv(B, n_steps) rounded to 16
    # sublanes) and >=2 grid steps whenever possible so v7x's second
    # TensorCore is used via the "parallel" axis.
    n_steps = pl.cdiv(B, tile_b)
    if n_steps == 1 and B >= 2 * SUBLANES_BF16:
        n_steps = 2
    TB = _round_up(pl.cdiv(B, n_steps), SUBLANES_BF16)
    grid_steps = pl.cdiv(B, TB)
    B_pad = grid_steps * TB

    # No lane padding of the state: its real last dim is the full array dim
    # (legal block shape).  Only the batch is padded; cast to bf16 once.
    x = state.astype(jnp.bfloat16)
    if B_pad != B:
        x = jnp.pad(x, ((0, B_pad - B), (0, 0)))

    # Advisory cost from the *real* (unpadded) dims.
    cost = pl.CostEstimate(
        flops=2 * B * (state_dim * mid_dim + mid_dim * mid_dim
                       + mid_dim * action_dim),
        transcendentals=B * action_dim,
        bytes_accessed=(B * state_dim * 2                       # streamed state (bf16)
                        + (state_dim * mid_dim + mid_dim * mid_dim
                           + mid_dim * action_dim) * 2          # weights (bf16)
                        + (2 * mid_dim + action_dim) * 4        # biases (f32)
                        + B * action_dim * 2),                  # output (bf16)
    )

    out = pl.pallas_call(
        _actor_ppo_kernel,
        out_shape=jax.ShapeDtypeStruct((B_pad, D), jnp.bfloat16),
        grid_spec=pltpu.PrefetchScalarGridSpec(
            num_scalar_prefetch=0,
            grid=(grid_steps,),
            in_specs=[
                # Streamed batch tile, real (un-padded) feature width.
                pl.BlockSpec((TB, state_dim), lambda i: (i, 0)),
                # Resident parameters: constant index_map, single-buffered
                # (double-buffering a constant block is pure VMEM waste).
                pl.BlockSpec((state_dim, D), lambda i: (0, 0),
                             pipeline_mode=pl.Buffered(1)),
                pl.BlockSpec((2, D, D), lambda i: (0, 0, 0),
                             pipeline_mode=pl.Buffered(1)),
                pl.BlockSpec((3, 1, D), lambda i: (0, 0, 0),
                             pipeline_mode=pl.Buffered(1)),
            ],
            out_specs=pl.BlockSpec((TB, D), lambda i: (i, 0)),  # lane-dense out
        ),
        compiler_params=pltpu.CompilerParams(
            dimension_semantics=("parallel",)),
        cost_estimate=cost,
    )(x, packed["w1"], packed["w23"], packed["b"])

    # Slice off batch/lane padding; return f32 like the PyTorch module.
    return out[:B, :action_dim].astype(jnp.float32)


def _orthogonal(key, shape, gain):
    """Deterministic orthogonal init (mirrors torch.nn.init.orthogonal_)."""
    rows, cols = shape
    a = jax.random.normal(key, (max(rows, cols), min(rows, cols)), jnp.float32)
    q, r = jnp.linalg.qr(a)
    q = q * jnp.sign(jnp.diag(r))
    if rows < cols:
        q = q.T
    return gain * q[:rows, :cols]


def init_params(key, state_dim, mid_dim, action_dim):
    ks = jax.random.split(key, 6)

    def linear_default(kw, kb, fan_in, fan_out):
        # PyTorch default nn.Linear init: U(-1/sqrt(fan_in), 1/sqrt(fan_in)).
        bound = 1.0 / np.sqrt(fan_in)
        w = jax.random.uniform(kw, (fan_in, fan_out), jnp.float32, -bound, bound)
        b = jax.random.uniform(kb, (1, fan_out), jnp.float32, -bound, bound)
        return w, b

    w1, b1 = linear_default(ks[0], ks[1], state_dim, mid_dim)
    w2, b2 = linear_default(ks[2], ks[3], mid_dim, mid_dim)
    # Last layer: layer_norm(layer, std=0.1) => orthogonal weight (gain 0.1),
    # bias = 1e-6.  Stored as (in, out) for x @ W.
    w3 = _orthogonal(ks[4], (action_dim, mid_dim), gain=0.1).T
    b3 = jnp.full((1, action_dim), 1e-6, jnp.float32)
    return {"w1": w1, "b1": b1, "w2": w2, "b2": b2, "w3": w3, "b3": b3}


def actor_ppo_reference(state, p):
    h1 = jnp.maximum(state @ p["w1"] + p["b1"], 0.0)
    h2 = jnp.maximum(h1 @ p["w2"] + p["b2"], 0.0)
    return jnp.tanh(h2 @ p["w3"] + p["b3"])


# TODO(synk): get_action / get_logprob_entropy / get_old_logprob (Gaussian
# sampling around the mean) are not part of forward() and are left to plain
# JAX on the kernel's output.

if __name__ == "__main__":
    state_dim, mid_dim, action_dim = 32, 32, 8

    key = jax.random.PRNGKey(0)
    k_state, k_params, k_state2 = jax.random.split(key, 3)
    params = init_params(k_params, state_dim, mid_dim, action_dim)
    # Pack ONCE; this is the canonical parameter storage for the kernel.
    packed = pack_params(params, state_dim, mid_dim, action_dim)

    # Small batch (single grid step).
    state = jax.random.normal(k_state, (8, state_dim), jnp.float32)
    out = actor_ppo_forward(state, packed)
    out = jax.block_until_ready(out)
    ref = actor_ppo_reference(state, params)
    np.testing.assert_allclose(np.asarray(out), np.asarray(ref),
                               rtol=2e-2, atol=2e-2)

    # Larger / ragged batch with several grid steps (exercises batch tiling,
    # batch padding, resident weights, and the parallel grid axis).
    state2 = jax.random.normal(k_state2, (100, state_dim), jnp.float32)
    out2 = actor_ppo_forward(state2, packed, tile_b=32)
    out2 = jax.block_until_ready(out2)
    ref2 = actor_ppo_reference(state2, params)
    np.testing.assert_allclose(np.asarray(out2), np.asarray(ref2),
                               rtol=2e-2, atol=2e-2)

    print("KERNEL_OK")
</pallas_src>

<mosaic_0001>
module attributes {stable_mosaic.version = 11 : i64} {
  func.func @_actor_ppo_kernel(%arg0: i32, %arg1: memref<16x32xbf16, #tpu.memory_space<vmem>>, %arg2: memref<32x128xbf16, #tpu.memory_space<vmem>>, %arg3: memref<2x128x128xbf16, #tpu.memory_space<vmem>>, %arg4: memref<3x1x128xf32, #tpu.memory_space<vmem>>, %arg5: memref<16x128xbf16, #tpu.memory_space<vmem>>) attributes {dimension_semantics = [#tpu.dimension_semantics<parallel>], iteration_bounds = array<i64: 1>, scalar_prefetch = 0 : i64, scratch_operands = 0 : i64, tpu.core_type = #tpu.core_type<tc>, window_params = [{transform_indices = @transform_0, window_bounds = array<i64: 16, 32>}, {pipeline_mode = #tpu.pipeline_mode<synchronous>, transform_indices = @transform_1, window_bounds = array<i64: 32, 128>}, {pipeline_mode = #tpu.pipeline_mode<synchronous>, transform_indices = @transform_2, window_bounds = array<i64: 2, 128, 128>}, {pipeline_mode = #tpu.pipeline_mode<synchronous>, transform_indices = @transform_3, window_bounds = array<i64: 3, 1, 128>}, {transform_indices = @transform_4, window_bounds = array<i64: 16, 128>}]} {
    %c0 = arith.constant 0 : index
    %c0_0 = arith.constant 0 : index
    %0 = vector.load %arg1[%c0, %c0_0] : memref<16x32xbf16, #tpu.memory_space<vmem>>, vector<16x32xbf16>
    %c0_1 = arith.constant 0 : index
    %c0_2 = arith.constant 0 : index
    %1 = vector.load %arg2[%c0_1, %c0_2] : memref<32x128xbf16, #tpu.memory_space<vmem>>, vector<32x128xbf16>
    %cst = arith.constant dense<0.000000e+00> : vector<16x128xf32>
    %2 = tpu.matmul %0, %1, %cst {dimension_numbers = #tpu.dot_dimension_numbers<[1], [0], [0], [1], [0, 0, 1, 1], [], []>} : vector<16x32xbf16>, vector<32x128xbf16>, vector<16x128xf32> -> vector<16x128xf32>
    %c0_3 = arith.constant 0 : index
    %c0_4 = arith.constant 0 : index
    %c0_5 = arith.constant 0 : index
    %3 = vector.load %arg4[%c0_3, %c0_4, %c0_5] : memref<3x1x128xf32, #tpu.memory_space<vmem>>, vector<1x1x128xf32>
    %4 = vector.shape_cast %3 : vector<1x1x128xf32> to vector<1x128xf32>
    %5 = vector.broadcast %4 : vector<1x128xf32> to vector<16x128xf32>
    %6 = arith.addf %2, %5 : vector<16x128xf32>
    %cst_6 = arith.constant 0.000000e+00 : f32
    %7 = vector.broadcast %cst_6 : f32 to vector<16x128xf32>
    %8 = arith.maximumf %6, %7 : vector<16x128xf32>
    %9 = arith.truncf %8 : vector<16x128xf32> to vector<16x128xbf16>
    %c0_7 = arith.constant 0 : index
    %c0_8 = arith.constant 0 : index
    %c0_9 = arith.constant 0 : index
    %10 = vector.load %arg3[%c0_7, %c0_8, %c0_9] : memref<2x128x128xbf16, #tpu.memory_space<vmem>>, vector<1x128x128xbf16>
    %11 = vector.shape_cast %10 : vector<1x128x128xbf16> to vector<128x128xbf16>
    %cst_10 = arith.constant dense<0.000000e+00> : vector<16x128xf32>
    %12 = tpu.matmul %9, %11, %cst_10 {dimension_numbers = #tpu.dot_dimension_numbers<[1], [0], [0], [1], [0, 0, 1, 1], [], []>} : vector<16x128xbf16>, vector<128x128xbf16>, vector<16x128xf32> -> vector<16x128xf32>
    %c1 = arith.constant 1 : index
    %c0_11 = arith.constant 0 : index
    %c0_12 = arith.constant 0 : index
    %13 = vector.load %arg4[%c1, %c0_11, %c0_12] : memref<3x1x128xf32, #tpu.memory_space<vmem>>, vector<1x1x128xf32>
    %14 = vector.shape_cast %13 : vector<1x1x128xf32> to vector<1x128xf32>
    %15 = vector.broadcast %14 : vector<1x128xf32> to vector<16x128xf32>
    %16 = arith.addf %12, %15 : vector<16x128xf32>
    %cst_13 = arith.constant 0.000000e+00 : f32
    %17 = vector.broadcast %cst_13 : f32 to vector<16x128xf32>
    %18 = arith.maximumf %16, %17 : vector<16x128xf32>
    %19 = arith.truncf %18 : vector<16x128xf32> to vector<16x128xbf16>
    %c1_14 = arith.constant 1 : index
    %c0_15 = arith.constant 0 : index
    %c0_16 = arith.constant 0 : index
    %20 = vector.load %arg3[%c1_14, %c0_15, %c0_16] : memref<2x128x128xbf16, #tpu.memory_space<vmem>>, vector<1x128x128xbf16>
    %21 = vector.shape_cast %20 : vector<1x128x128xbf16> to vector<128x128xbf16>
    %cst_17 = arith.constant dense<0.000000e+00> : vector<16x128xf32>
    %22 = tpu.matmul %19, %21, %cst_17 {dimension_numbers = #tpu.dot_dimension_numbers<[1], [0], [0], [1], [0, 0, 1, 1], [], []>} : vector<16x128xbf16>, vector<128x128xbf16>, vector<16x128xf32> -> vector<16x128xf32>
    %c2 = arith.constant 2 : index
    %c0_18 = arith.constant 0 : index
    %c0_19 = arith.constant 0 : index
    %23 = vector.load %arg4[%c2, %c0_18, %c0_19] : memref<3x1x128xf32, #tpu.memory_space<vmem>>, vector<1x1x128xf32>
    %24 = vector.shape_cast %23 : vector<1x1x128xf32> to vector<1x128xf32>
    %25 = vector.broadcast %24 : vector<1x128xf32> to vector<16x128xf32>
    %26 = arith.addf %22, %25 : vector<16x128xf32>
    %27 = math.tanh %26 : vector<16x128xf32>
    %28 = arith.truncf %27 : vector<16x128xf32> to vector<16x128xbf16>
    %c0_20 = arith.constant 0 : index
    %c0_21 = arith.constant 0 : index
    %29 = vector.load %arg5[%c0_20, %c0_21] : memref<16x128xbf16, #tpu.memory_space<vmem>>, vector<16x128xbf16>
    tpu.vector_store %arg5[%c0_20, %c0_21], %28 {strides = array<i32>} : memref<16x128xbf16, #tpu.memory_space<vmem>>, vector<16x128xbf16>,
    return
  }
  func.func @transform_0(%arg0: i32) -> (i32, i32) {
    %c0_i32 = arith.constant 0 : i32
    %c0_i32_0 = arith.constant 0 : i32
    return %arg0, %c0_i32 : i32, i32
  }
  func.func @transform_1(%arg0: i32) -> (i32, i32) {
    %c0_i32 = arith.constant 0 : i32
    %c0_i32_0 = arith.constant 0 : i32
    %c0_i32_1 = arith.constant 0 : i32
    return %c0_i32, %c0_i32_0 : i32, i32
  }
  func.func @transform_2(%arg0: i32) -> (i32, i32, i32) {
    %c0_i32 = arith.constant 0 : i32
    %c0_i32_0 = arith.constant 0 : i32
    %c0_i32_1 = arith.constant 0 : i32
    %c0_i32_2 = arith.constant 0 : i32
    return %c0_i32, %c0_i32_0, %c0_i32_1 : i32, i32, i32
  }
  func.func @transform_3(%arg0: i32) -> (i32, i32, i32) {
    %c0_i32 = arith.constant 0 : i32
    %c0_i32_0 = arith.constant 0 : i32
    %c0_i32_1 = arith.constant 0 : i32
    %c0_i32_2 = arith.constant 0 : i32
    return %c0_i32, %c0_i32_0, %c0_i32_1 : i32, i32, i32
  }
  func.func @transform_4(%arg0: i32) -> (i32, i32) {
    %c0_i32 = arith.constant 0 : i32
    %c0_i32_0 = arith.constant 0 : i32
    return %arg0, %c0_i32 : i32, i32
  }
}

</mosaic_0001>

<llo_original>
// kernel: tpu_custom_call.1
$region0: #{tpu_custom_call.1}
  #allocation0 [shape = 'u32[]', space=smem, size = 0x4, offset = 0x4, fixed_abs, tag = 'smem constant byte address 0x4 - core index']
  #allocation1 [shape = 'u32[144,128]{1,0:T(1,128)}', space=vmem, size = 0x12000, scoped, tag = 'internal scratch']
  %s0 = inlined_call_operand.hbm [shape: bf16[16,32], index: 0, kind: input, shape index: {}]
  %s1 = inlined_call_operand.hbm [shape: bf16[32,128], index: 1, kind: input, shape index: {}]
  %s2 = inlined_call_operand.hbm [shape: bf16[2,128,128], index: 2, kind: input, shape index: {}]
  %s3 = inlined_call_operand.vmem [shape: f32[3,1,128], index: 3, kind: input, shape index: {}]
  %s4 = inlined_call_operand.hbm [shape: bf16[16,128], index: 4, kind: output, shape index: {}]
  %s5 = sld [smem:[#allocation0]]
  $region38: #{tpu_custom_call.1} parent=0
    _
  %s7 = ssub.s32 1, %s5
  %s8 = scalar_select 0, %s7, %s5
  $region1: #{tpu_custom_call.1} parent=0
    #allocation2 [shape = 'u8[4096]{0}', space=vmem, size = 0x1000, scoped, tag = 'input window, operand 0, single buffered']
    #allocation3 [shape = 's32[1]{0}', space=sflag, size = 0x4, scoped, tag = 'scoped memory for tpu_custom_call.1']
    #allocation4 [shape = 's32[1]{0}', space=sflag, size = 0x4, scoped, tag = 'scoped memory for tpu_custom_call.1']
    #allocation5 [shape = 'u8[8192]{0}', space=vmem, size = 0x2000, scoped, tag = 'input window, operand 1, single buffered']
    #allocation6 [shape = 's32[1]{0}', space=sflag, size = 0x4, scoped, tag = 'scoped memory for tpu_custom_call.1']
    #allocation7 [shape = 'u8[65536]{0}', space=vmem, size = 0x10000, scoped, tag = 'input window, operand 2, single buffered']
    #allocation8 [shape = 'u8[4096]{0}', space=vmem, size = 0x1000, scoped, tag = 'output window, operand 0, single buffered']
    %9 = vsyncpa [#allocation3], 0
    %10 = vsyncpa [#allocation6], 0
    %11 = vsyncpa [#allocation4], 0
    // Predicated region
    $region2: #{tpu_custom_call.1} parent=1 // pred_check
      _
    $region3: #{tpu_custom_call.1} parent=1 // pred_check_branch
      %13 = sbr.rel (0) target = $region5
    $region4: #{tpu_custom_call.1} parent=1 // pred_region
      %s15 = ssub.s32 128, 128
      %16 = vsyncadd [#allocation3], %s15
      %s17 = sshll.u32 [#allocation2], 4
      %s18 = int_to_ptr.vmem [resolvable:$true] %s17
      %23 = dma.hbm_to_vmem [thread:$0]  %s0, 128, %s18, [#allocation3], 64, 64, 4
    $region5: #{tpu_custom_call.1} parent=1 // pred_fallthru
      _
    // Predicated region
    $region6: #{tpu_custom_call.1} parent=1 // pred_check
      _
    $region7: #{tpu_custom_call.1} parent=1 // pred_check_branch
      %25 = sbr.rel (0) target = $region9
    $region8: #{tpu_custom_call.1} parent=1 // pred_region
      %s27 = ssub.s32 256, 256
      %28 = vsyncadd [#allocation6], %s27
      %s29 = sshll.u32 [#allocation5], 4
      %s30 = int_to_ptr.vmem [resolvable:$true] %s29
      %35 = dma.hbm_to_vmem [thread:$0]  %s1, 256, %s30, [#allocation6], 64, 64, 4
    $region9: #{tpu_custom_call.1} parent=1 // pred_fallthru
      _
    // Predicated region
    $region10: #{tpu_custom_call.1} parent=1 // pred_check
      _
    $region11: #{tpu_custom_call.1} parent=1 // pred_check_branch
      %37 = sbr.rel (0) target = $region13
    $region12: #{tpu_custom_call.1} parent=1 // pred_region
      %s39 = ssub.s32 2048, 2048
      %40 = vsyncadd [#allocation6], %s39
      %s41 = sshll.u32 [#allocation7], 4
      %s42 = int_to_ptr.vmem [resolvable:$true] %s41
      %47 = dma.hbm_to_vmem [thread:$0]  %s2, 2048, %s42, [#allocation6], 64, 64, 4
    $region13: #{tpu_custom_call.1} parent=1 // pred_fallthru
      _
    // Predicated region
    $region14: #{tpu_custom_call.1} parent=1 // pred_check
      _
    $region15: #{tpu_custom_call.1} parent=1 // pred_check_branch
      %49 = sbr.rel (0) target = $region17
    $region16: #{tpu_custom_call.1} parent=1 // pred_region
      _
    $region17: #{tpu_custom_call.1} parent=1 // pred_fallthru
      _
    // Predicated region
    $region18: #{tpu_custom_call.1} parent=1 // pred_check
      _
    $region19: #{tpu_custom_call.1} parent=1 // pred_check_branch
      %51 = sbr.rel (0) target = $region21
    $region20: #{tpu_custom_call.1} parent=1 // pred_region
      %52 = dma.done [#allocation3], 128
    $region21: #{tpu_custom_call.1} parent=1 // pred_fallthru
      _
    // Predicated region
    $region22: #{tpu_custom_call.1} parent=1 // pred_check
      _
    $region23: #{tpu_custom_call.1} parent=1 // pred_check_branch
      %54 = sbr.rel (0) target = $region25
    $region24: #{tpu_custom_call.1} parent=1 // pred_region
      %55 = dma.done [#allocation6], 256
    $region25: #{tpu_custom_call.1} parent=1 // pred_fallthru
      _
    // Predicated region
    $region26: #{tpu_custom_call.1} parent=1 // pred_check
      _
    $region27: #{tpu_custom_call.1} parent=1 // pred_check_branch
      %57 = sbr.rel (0) target = $region29
    $region28: #{tpu_custom_call.1} parent=1 // pred_region
      %58 = dma.done [#allocation6], 2048
    $region29: #{tpu_custom_call.1} parent=1 // pred_fallthru
      _
    %v60 = vld [vmem:[#allocation2] sm:$0xf]
    %v61 = vld [vmem:[#allocation2 + $0x4] sm:$0xf]
    %v62 = vld [vmem:[#allocation5] sm:$0xf]
    %v63 = vld [vmem:[#allocation5 + $0x4] sm:$0xf]
    %v64 = vld [vmem:[#allocation5 + $0x8] sm:$0xf]
    %v65 = vld [vmem:[#allocation5 + $0xc] sm:$0xf]
    %v66 = vld [vmem:[%s3] sm:$0x1]
    %v68 = vlaneseq
    %v69 = vshrl.u32 %v68, 7
    %v70 = vsub.s32 0, %v69
    %v71 = vrot.slane %v66, %v70
    %v75 = vunpack.c.l.b16 %v60
    %v76 = vunpack.c.l.b16 %v61
    %v77 = vpack.c.b16 %v76, %v75
    %v82 = vunpack.c.l.b16 %v62
    %v83 = vunpack.c.l.b16 %v63
    %v84 = vunpack.c.l.b16 %v64
    %v85 = vunpack.c.l.b16 %v65
    %v86 = vpack.c.b16 %v83, %v82
    %v87 = vpack.c.b16 %v85, %v84
    %vm90 = vcmask 261120
    %v92 = vsel %vm90, %v77, 0
    %94 = vmatprep.subr.bf16.mxu0 0
    %95 = vmatpush1.bf16.msra.mxu0 %v86
    %96 = vmatprep.subr.bf16.mxu0 0
    %97 = vmatpush1.bf16.msra.mxu0 %v87
    %98 = vmatprep.subr.bf16.mxu0 0
    %99 = vmatpush1.bf16.msra.mxu0 0
    %100 = vmatprep.subr.bf16.mxu0 0
    %101 = vmatpush1.bf16.msra.mxu0 0
    %102 = vmatprep.subr.bf16.mxu0 0
    %103 = vmatpush1.bf16.msra.mxu0 0
    %104 = vmatprep.subr.bf16.mxu0 0
    %105 = vmatpush1.bf16.msra.mxu0 0
    %106 = vmatprep.subr.bf16.mxu0 0
    %107 = vmatpush1.bf16.msra.mxu0 0
    %108 = vmatprep.subr.bf16.mxu0 0
    %109 = vmatpush1.bf16.msra.mxu0 0
    %110 = vmatprep.subr.bf16.mxu0 0
    %111 = vmatpush1.bf16.msra.mxu0 0
    %112 = vmatprep.subr.bf16.mxu0 0
    %113 = vmatpush1.bf16.msra.mxu0 0
    %114 = vmatprep.subr.bf16.mxu0 0
    %115 = vmatpush1.bf16.msra.mxu0 0
    %116 = vmatprep.subr.bf16.mxu0 0
    %117 = vmatpush1.bf16.msra.mxu0 0
    %118 = vmatprep.subr.bf16.mxu0 0
    %119 = vmatpush1.bf16.msra.mxu0 0
    %120 = vmatprep.subr.bf16.mxu0 0
    %121 = vmatpush1.bf16.msra.mxu0 0
    %122 = vmatprep.subr.bf16.mxu0 0
    %123 = vmatpush1.bf16.msra.mxu0 0
    %124 = vmatprep.subr.bf16.mxu0 0
    %125 = vmatpush1.bf16.msra.mxu0 0
    %126 = vmatprep.mubr.bf16.mxu0 0
    %127 = vmatmul.mubr.bf16.gmra.mrb[0].mxu0 %v92
    %v128 = vpop.f32.mrb[0].mxu0
    %v129 = vadd.f32 %v71, %v128
    %v130 = vpop.f32.mrb[0].mxu0
    %v131 = vpop.f32.mrb[0].mxu0
    %v132 = vadd.f32 %v71, %v131
    %v133 = vpop.f32.mrb[0].mxu0
    %134 = vdwg.mxu0
    %v135 = vmax.f32 %v129, 0.0
    %v136 = vmax.f32 %v132, 0.0
    %v137 = vpack.c.bf16 %v136, %v135
    %v138 = vld [vmem:[#allocation7] sm:$0xf]
    %v139 = vld [vmem:[#allocation7 + $0x4] sm:$0xf]
    %v140 = vld [vmem:[#allocation7 + $0x8] sm:$0xf]
    %v141 = vld [vmem:[#allocation7 + $0xc] sm:$0xf]
    %v142 = vld [vmem:[#allocation7 + $0x10] sm:$0xf]
    %v143 = vld [vmem:[#allocation7 + $0x14] sm:$0xf]
    %v144 = vld [vmem:[#allocation7 + $0x18] sm:$0xf]
    %v145 = vld [vmem:[#allocation7 + $0x1c] sm:$0xf]
    %v146 = vld [vmem:[#allocation7 + $0x20] sm:$0xf]
    %v147 = vld [vmem:[#allocation7 + $0x24] sm:$0xf]
    %v148 = vld [vmem:[#allocation7 + $0x28] sm:$0xf]
    %v149 = vld [vmem:[#allocation7 + $0x2c] sm:$0xf]
    %v150 = vld [vmem:[#allocation7 + $0x30] sm:$0xf]
    %v151 = vld [vmem:[#allocation7 + $0x34] sm:$0xf]
    %v152 = vld [vmem:[#allocation7 + $0x38] sm:$0xf]
    %v153 = vld [vmem:[#allocation7 + $0x3c] sm:$0xf]
    %s154 = scalar_lea.vmem %s3, 1
    %v155 = vld [vmem:[%s154] sm:$0x1]
    %v157 = vlaneseq
    %v158 = vshrl.u32 %v157, 7
    %v159 = vsub.s32 0, %v158
    %v160 = vrot.slane %v155, %v159
    %v178 = vunpack.c.l.b16 %v138
    %v179 = vunpack.c.l.b16 %v139
    %v180 = vunpack.c.l.b16 %v140
    %v181 = vunpack.c.l.b16 %v141
    %v182 = vunpack.c.l.b16 %v142
    %v183 = vunpack.c.l.b16 %v143
    %v184 = vunpack.c.l.b16 %v144
    %v185 = vunpack.c.l.b16 %v145
    %v186 = vunpack.c.l.b16 %v146
    %v187 = vunpack.c.l.b16 %v147
    %v188 = vunpack.c.l.b16 %v148
    %v189 = vunpack.c.l.b16 %v149
    %v190 = vunpack.c.l.b16 %v150
    %v191 = vunpack.c.l.b16 %v151
    %v192 = vunpack.c.l.b16 %v152
    %v193 = vunpack.c.l.b16 %v153
    %v194 = vpack.c.b16 %v179, %v178
    %v195 = vpack.c.b16 %v181, %v180
    %v196 = vpack.c.b16 %v183, %v182
    %v197 = vpack.c.b16 %v185, %v184
    %v198 = vpack.c.b16 %v187, %v186
    %v199 = vpack.c.b16 %v189, %v188
    %v200 = vpack.c.b16 %v191, %v190
    %v201 = vpack.c.b16 %v193, %v192
    %210 = vmatprep.subr.bf16.mxu0 0
    %211 = vmatpush1.bf16.msra.mxu0 %v194
    %212 = vmatprep.subr.bf16.mxu0 0
    %213 = vmatpush1.bf16.msra.mxu0 %v195
    %214 = vmatprep.subr.bf16.mxu0 0
    %215 = vmatpush1.bf16.msra.mxu0 %v196
    %216 = vmatprep.subr.bf16.mxu0 0
    %217 = vmatpush1.bf16.msra.mxu0 %v197
    %218 = vmatprep.subr.bf16.mxu0 0
    %219 = vmatpush1.bf16.msra.mxu0 %v198
    %220 = vmatprep.subr.bf16.mxu0 0
    %221 = vmatpush1.bf16.msra.mxu0 %v199
    %222 = vmatprep.subr.bf16.mxu0 0
    %223 = vmatpush1.bf16.msra.mxu0 %v200
    %224 = vmatprep.subr.bf16.mxu0 0
    %225 = vmatpush1.bf16.msra.mxu0 %v201
    %226 = vmatprep.subr.bf16.mxu0 0
    %227 = vmatpush1.bf16.msra.mxu0 0
    %228 = vmatprep.subr.bf16.mxu0 0
    %229 = vmatpush1.bf16.msra.mxu0 0
    %230 = vmatprep.subr.bf16.mxu0 0
    %231 = vmatpush1.bf16.msra.mxu0 0
    %232 = vmatprep.subr.bf16.mxu0 0
    %233 = vmatpush1.bf16.msra.mxu0 0
    %234 = vmatprep.subr.bf16.mxu0 0
    %235 = vmatpush1.bf16.msra.mxu0 0
    %236 = vmatprep.subr.bf16.mxu0 0
    %237 = vmatpush1.bf16.msra.mxu0 0
    %238 = vmatprep.subr.bf16.mxu0 0
    %239 = vmatpush1.bf16.msra.mxu0 0
    %240 = vmatprep.subr.bf16.mxu0 0
    %241 = vmatpush1.bf16.msra.mxu0 0
    %242 = vmatprep.mubr.bf16.mxu0 0
    %243 = vmatmul.mubr.bf16.gmra.mrb[0].mxu0 %v137
    %v244 = vpop.f32.mrb[0].mxu0
    %v245 = vadd.f32 %v160, %v244
    %v246 = vpop.f32.mrb[0].mxu0
    %v247 = vpop.f32.mrb[0].mxu0
    %v248 = vadd.f32 %v160, %v247
    %v249 = vpop.f32.mrb[0].mxu0
    %250 = vdwg.mxu0
    %v251 = vmax.f32 %v245, 0.0
    %v252 = vmax.f32 %v248, 0.0
    %v253 = vpack.c.bf16 %v252, %v251
    %s254 = scalar_lea.vmem [#allocation7], 64
    %v255 = vld [vmem:[%s254] sm:$0xf]
    %v256 = vld [vmem:[%s254 + $0x4] sm:$0xf]
    %v257 = vld [vmem:[%s254 + $0x8] sm:$0xf]
    %v258 = vld [vmem:[%s254 + $0xc] sm:$0xf]
    %v259 = vld [vmem:[%s254 + $0x10] sm:$0xf]
    %v260 = vld [vmem:[%s254 + $0x14] sm:$0xf]
    %v261 = vld [vmem:[%s254 + $0x18] sm:$0xf]
    %v262 = vld [vmem:[%s254 + $0x1c] sm:$0xf]
    %v263 = vld [vmem:[%s254 + $0x20] sm:$0xf]
    %v264 = vld [vmem:[%s254 + $0x24] sm:$0xf]
    %v265 = vld [vmem:[%s254 + $0x28] sm:$0xf]
    %v266 = vld [vmem:[%s254 + $0x2c] sm:$0xf]
    %v267 = vld [vmem:[%s254 + $0x30] sm:$0xf]
    %v268 = vld [vmem:[%s254 + $0x34] sm:$0xf]
    %v269 = vld [vmem:[%s254 + $0x38] sm:$0xf]
    %v270 = vld [vmem:[%s254 + $0x3c] sm:$0xf]
    %s271 = scalar_lea.vmem %s3, 2
    %v272 = vld [vmem:[%s271] sm:$0x1]
    %v274 = vlaneseq
    %v275 = vshrl.u32 %v274, 7
    %v276 = vsub.s32 0, %v275
    %v277 = vrot.slane %v272, %v276
    %v295 = vunpack.c.l.b16 %v255
    %v296 = vunpack.c.l.b16 %v256
    %v297 = vunpack.c.l.b16 %v257
    %v298 = vunpack.c.l.b16 %v258
    %v299 = vunpack.c.l.b16 %v259
    %v300 = vunpack.c.l.b16 %v260
    %v301 = vunpack.c.l.b16 %v261
    %v302 = vunpack.c.l.b16 %v262
    %v303 = vunpack.c.l.b16 %v263
    %v304 = vunpack.c.l.b16 %v264
    %v305 = vunpack.c.l.b16 %v265
    %v306 = vunpack.c.l.b16 %v266
    %v307 = vunpack.c.l.b16 %v267
    %v308 = vunpack.c.l.b16 %v268
    %v309 = vunpack.c.l.b16 %v269
    %v310 = vunpack.c.l.b16 %v270
    %v311 = vpack.c.b16 %v296, %v295
    %v312 = vpack.c.b16 %v298, %v297
    %v313 = vpack.c.b16 %v300, %v299
    %v314 = vpack.c.b16 %v302, %v301
    %v315 = vpack.c.b16 %v304, %v303
    %v316 = vpack.c.b16 %v306, %v305
    %v317 = vpack.c.b16 %v308, %v307
    %v318 = vpack.c.b16 %v310, %v309
    %327 = vmatprep.subr.bf16.mxu0 0
    %328 = vmatpush1.bf16.msra.mxu0 %v311
    %329 = vmatprep.subr.bf16.mxu0 0
    %330 = vmatpush1.bf16.msra.mxu0 %v312
    %331 = vmatprep.subr.bf16.mxu0 0
    %332 = vmatpush1.bf16.msra.mxu0 %v313
    %333 = vmatprep.subr.bf16.mxu0 0
    %334 = vmatpush1.bf16.msra.mxu0 %v314
    %335 = vmatprep.subr.bf16.mxu0 0
    %336 = vmatpush1.bf16.msra.mxu0 %v315
    %337 = vmatprep.subr.bf16.mxu0 0
    %338 = vmatpush1.bf16.msra.mxu0 %v316
    %339 = vmatprep.subr.bf16.mxu0 0
    %340 = vmatpush1.bf16.msra.mxu0 %v317
    %341 = vmatprep.subr.bf16.mxu0 0
    %342 = vmatpush1.bf16.msra.mxu0 %v318
    %343 = vmatprep.subr.bf16.mxu0 0
    %344 = vmatpush1.bf16.msra.mxu0 0
    %345 = vmatprep.subr.bf16.mxu0 0
    %346 = vmatpush1.bf16.msra.mxu0 0
    %347 = vmatprep.subr.bf16.mxu0 0
    %348 = vmatpush1.bf16.msra.mxu0 0
    %349 = vmatprep.subr.bf16.mxu0 0
    %350 = vmatpush1.bf16.msra.mxu0 0
    %351 = vmatprep.subr.bf16.mxu0 0
    %352 = vmatpush1.bf16.msra.mxu0 0
    %353 = vmatprep.subr.bf16.mxu0 0
    %354 = vmatpush1.bf16.msra.mxu0 0
    %355 = vmatprep.subr.bf16.mxu0 0
    %356 = vmatpush1.bf16.msra.mxu0 0
    %357 = vmatprep.subr.bf16.mxu0 0
    %358 = vmatpush1.bf16.msra.mxu0 0
    %359 = vmatprep.mubr.bf16.mxu0 0
    %360 = vmatmul.mubr.bf16.gmra.mrb[0].mxu0 %v253
    %v361 = vpop.f32.mrb[0].mxu0
    %v362 = vadd.f32 %v277, %v361
    %v363 = vpop.f32.mrb[0].mxu0
    %v364 = vpop.f32.mrb[0].mxu0
    %v365 = vadd.f32 %v277, %v364
    %v366 = vpop.f32.mrb[0].mxu0
    %367 = vdwg.mxu0
    %v368 = vtanh.pop %v362
    %v369 = vtanh.pop %v365
    %v370 = vpack.c.bf16 %v369, %v368
    %v372 = vunpack.c.l.b16 %v370
    %v373 = vunpack.c.h.b16 %v370
    %v374 = vpack.c.b16 %v372, %v372
    %v375 = vpack.c.b16 %v373, %v373
    %378 = vst [vmem:[#allocation8] sm:$0xf] %v374
    %379 = vst [vmem:[#allocation8 + $0x4] sm:$0xf] %v375
    // Predicated region
    $region30: #{tpu_custom_call.1} parent=1 // pred_check
      _
    $region31: #{tpu_custom_call.1} parent=1 // pred_check_branch
      %381 = sbr.rel (0) target = $region33
    $region32: #{tpu_custom_call.1} parent=1 // pred_region
      %s383 = ssub.s32 128, 128
      %384 = vsyncadd [#allocation4], %s383
      %s385 = sshll.u32 [#allocation8], 4
      %s386 = int_to_ptr.vmem [resolvable:$true] %s385
      %391 = dma.vmem_to_hbm [thread:$0]  %s386, 128, %s4, [#allocation4], 64, 64, 4
    $region33: #{tpu_custom_call.1} parent=1 // pred_fallthru
      _
    // Predicated region
    $region34: #{tpu_custom_call.1} parent=1 // pred_check
      _
    $region35: #{tpu_custom_call.1} parent=1 // pred_check_branch
      %393 = sbr.rel (0) target = $region37
    $region36: #{tpu_custom_call.1} parent=1 // pred_region
      %394 = dma.done [#allocation4], 128
    $region37: #{tpu_custom_call.1} parent=1 // pred_fallthru
      _
    %395 = vsyncpa [#allocation3], 1
    %396 = vsyncpa [#allocation6], 1
    %397 = vsyncpa [#allocation4], 1

</llo_original>
